<compile_context>
chip_gen: v6e
topology: v6e:2x2x1
jax: 0.10.0
libtpu: 0.0.40
codegen_flags: <defaults>
</compile_context>

<pallas_src>
import math

import jax
import jax.numpy as jnp
from jax.experimental import pallas as pl
from jax.experimental.pallas import tpu as pltpu


# ---- shared-range-reduction sin/cos (Cephes single-precision coefficients) ----------
_TWO_OVER_PI = 0.6366197723675814
# pi/2 split into parts with short mantissas so q * part is exact in f32 for |q| < 2^10.
_PIO2_HI = 1.5703125
_PIO2_MED = 4.837512969970703125e-4
_PIO2_LO = 7.54978995489188216e-8
_S1, _S2, _S3 = -1.6666654611e-1, 8.3321608736e-3, -1.9515295891e-4      # sinf poly
_C1, _C2, _C3 = 4.166664568298827e-2, -1.388731625493765e-3, 2.443315711809948e-5  # cosf


def _sin_or_cos(t, cos_flag):
    """Per-lane select(cos_flag, cos(t), sin(t)) with ONE shared range reduction."""
    q = jnp.floor(t * _TWO_OVER_PI + 0.5)              # nearest quadrant
    r = t - q * _PIO2_HI
    r = r - q * _PIO2_MED
    r = r - q * _PIO2_LO                                # r in ~[-pi/4, pi/4]
    r2 = r * r
    ps = ((_S3 * r2 + _S2) * r2 + _S1) * (r2 * r) + r                  # sin(r)
    pc = ((_C3 * r2 + _C2) * r2 + _C1) * (r2 * r2) - 0.5 * r2 + 1.0    # cos(r)
    # sin(t) selects on quadrant q; cos(t) = sin(t + pi/2) selects on quadrant q + 1.
    qi = (q.astype(jnp.int32) + cos_flag) & 3
    return jnp.where(qi == 0, ps,
                     jnp.where(qi == 1, pc,
                               jnp.where(qi == 2, -ps, -pc)))


def _make_kernel(k: int):
    def kernel(x_ref, fmat_ref, flag_ref, out_ref):
        # x_ref:    (TB2, k)   f32 — k original batch rows folded into each packed row
        # fmat_ref: (k, W)     f32 — block-diagonal tiled frequency table (resident)
        # flag_ref: (1, W)     i32 — 0 for sin lanes, 1 for cos lanes (resident)
        # out_ref:  (TB2, W)   — lane-dense packed output (W % 128 == 0 when k packs)
        x = x_ref[...]
        f = fmat_ref[...]
        # Packed outer product: lane l of packed row j gets x[j, l // dim] * f_dim[l % dim].
        # Row m of fmat is zero outside lane-group m, so exactly one term is nonzero per
        # lane -> emb is the exact f32 product (pure VPU, MXU precision irrelevant).
        emb = x[:, 0:1] * f[0:1, :]
        for m in range(1, k):
            emb = emb + x[:, m:m + 1] * f[m:m + 1, :]
        out_ref[...] = _sin_or_cos(emb, flag_ref[...]).astype(out_ref.dtype)

    return kernel


def _round_up(n: int, m: int) -> int:
    return ((n + m - 1) // m) * m


def sinusoidal_pos_emb(x: jax.Array, dim: int, out_dtype=jnp.float32) -> jax.Array:
    """Pallas TPU implementation of SinusoidalPosEmb.forward.

    Args:
      x:         (B,) array of positions / timesteps.
      dim:       embedding dimension (even, >= 4).
      out_dtype: output dtype (f32 default; bf16 halves HBM write traffic).
    Returns:
      (B, dim) embedding: [sin(x*f), cos(x*f)].
    """
    assert x.ndim == 1, "x must be a 1-D batch of scalar positions"
    assert dim % 2 == 0, "dim must be even (sin/cos halves are concatenated)"
    assert dim >= 4, "dim must be >= 4 (half_dim - 1 must be nonzero)"

    b = int(x.shape[0])
    half = dim // 2
    scale = math.log(10000.0) / (half - 1)

    # Packing factor: fold k rows into one lane-dense row of width k*dim (mult. of 128).
    k = 128 // math.gcd(dim, 128)
    while k > 1 and b % k != 0:        # keep the (B,dim) <-> (B/k, k*dim) reshape free
        k //= 2
    w = k * dim
    b2 = b // k

    # Constant tables (tiny; VMEM-resident across all grid steps).
    freqs = jnp.exp(jnp.arange(half, dtype=jnp.float32) * (-scale))       # (half,)
    f_dim = jnp.concatenate([freqs, freqs])                                # (dim,)
    # fmat[m, l] = f_dim[l % dim] if l // dim == m else 0
    fmat = (jnp.eye(k, dtype=jnp.float32)[:, :, None] *
            f_dim[None, None, :]).reshape(k, w)
    cos_flag = jnp.tile(
        jnp.concatenate([jnp.zeros((half,), jnp.int32), jnp.ones((half,), jnp.int32)]),
        (k,),
    ).reshape(1, w)

    x2 = x.astype(jnp.float32).reshape(b2, k)

    # Row tiling: ~2 MiB of output per grid step; >=2 steps when batch allows (v7x megacore).
    itemsize = jnp.dtype(out_dtype).itemsize
    sub = 16 if itemsize < 4 else 8                     # min sublane multiple for out dtype
    target_bytes = 2 * 1024 * 1024
    tb2 = max(sub, ((target_bytes // (w * itemsize)) // sub) * sub)
    if b2 >= 2 * sub:
        tb2 = min(tb2, _round_up(pl.cdiv(b2, 2), sub))  # >=2 parallel grid steps
    if tb2 >= b2:
        tb2 = b2                                        # single full block
    grid = (pl.cdiv(b2, tb2),)

    cost = pl.CostEstimate(
        flops=int(b2 * w * (2 * k + 30)),               # packed outer product + polys
        transcendentals=int(b * dim),                   # one sin-or-cos per element
        bytes_accessed=int(x2.size * 4 + fmat.size * 4 + cos_flag.size * 4
                           + b * dim * itemsize),
    )

    out2 = pl.pallas_call(
        _make_kernel(k),
        out_shape=jax.ShapeDtypeStruct((b2, w), out_dtype),
        grid=grid,
        in_specs=[
            pl.BlockSpec((tb2, k), lambda i: (i, 0)),   # x rows (k values per packed row)
            pl.BlockSpec((k, w), lambda i: (0, 0)),     # frequency table, resident
            pl.BlockSpec((1, w), lambda i: (0, 0)),     # sin/cos lane flag, resident
        ],
        out_specs=pl.BlockSpec((tb2, w), lambda i: (i, 0)),
        compiler_params=pltpu.CompilerParams(dimension_semantics=("parallel",)),
        cost_estimate=cost,
    )(x2, fmat, cos_flag)

    return out2.reshape(b, dim)        # free: identical row-major byte layout


def _reference(x: jax.Array, dim: int) -> jax.Array:
    half_dim = dim // 2
    scale = math.log(10000.0) / (half_dim - 1)
    freqs = jnp.exp(jnp.arange(half_dim, dtype=jnp.float32) * -scale)
    emb = x.astype(jnp.float32)[:, None] * freqs[None, :]
    return jnp.concatenate([jnp.sin(emb), jnp.cos(emb)], axis=-1)


if __name__ == "__main__":
    # NOTE: at this tiny demo shape a standalone pallas_call is pure launch overhead;
    # in a real model this op should be fused into the consuming time-embedding MLP.
    key = jax.random.PRNGKey(0)
    B, DIM = 8, 32
    x = jax.random.uniform(key, (B,), dtype=jnp.float32, minval=0.0, maxval=1000.0)

    out = jax.block_until_ready(sinusoidal_pos_emb(x, DIM))
    ref = _reference(x, DIM)

    assert out.shape == (B, DIM)
    max_err = float(jnp.max(jnp.abs(out - ref)))
    assert jnp.allclose(out, ref, atol=1e-5, rtol=1e-5), f"mismatch vs reference (max abs err {max_err})"

    print("KERNEL_OK")
</pallas_src>

<mosaic_0001>
module attributes {stable_mosaic.version = 11 : i64} {
  func.func @kernel(%arg0: i32, %arg1: memref<2x4xf32, #tpu.memory_space<vmem>>, %arg2: memref<4x128xf32, #tpu.memory_space<vmem>>, %arg3: memref<1x128xi32, #tpu.memory_space<vmem>>, %arg4: memref<2x128xf32, #tpu.memory_space<vmem>>) attributes {dimension_semantics = [#tpu.dimension_semantics<parallel>], iteration_bounds = array<i64: 1>, scalar_prefetch = 0 : i64, scratch_operands = 0 : i64, tpu.core_type = #tpu.core_type<tc>, window_params = [{transform_indices = @transform_0, window_bounds = array<i64: 2, 4>}, {pipeline_mode = #tpu.pipeline_mode<synchronous>, transform_indices = @transform_1, window_bounds = array<i64: 4, 128>}, {pipeline_mode = #tpu.pipeline_mode<synchronous>, transform_indices = @transform_2, window_bounds = array<i64: 1, 128>}, {transform_indices = @transform_3, window_bounds = array<i64: 2, 128>}]} {
    %c0 = arith.constant 0 : index
    %c0_0 = arith.constant 0 : index
    %0 = vector.load %arg1[%c0, %c0_0] : memref<2x4xf32, #tpu.memory_space<vmem>>, vector<2x4xf32>
    %c0_1 = arith.constant 0 : index
    %c0_2 = arith.constant 0 : index
    %1 = vector.load %arg2[%c0_1, %c0_2] : memref<4x128xf32, #tpu.memory_space<vmem>>, vector<4x128xf32>
    %2 = vector.extract_strided_slice %0 {offsets = [0, 0], sizes = [2, 1], strides = [1, 1]} : vector<2x4xf32> to vector<2x1xf32>
    %3 = vector.extract_strided_slice %1 {offsets = [0, 0], sizes = [1, 128], strides = [1, 1]} : vector<4x128xf32> to vector<1x128xf32>
    %4 = vector.broadcast %2 : vector<2x1xf32> to vector<2x128xf32>
    %5 = vector.broadcast %3 : vector<1x128xf32> to vector<2x128xf32>
    %6 = arith.mulf %4, %5 : vector<2x128xf32>
    %7 = vector.extract_strided_slice %0 {offsets = [0, 1], sizes = [2, 1], strides = [1, 1]} : vector<2x4xf32> to vector<2x1xf32>
    %8 = vector.extract_strided_slice %1 {offsets = [1, 0], sizes = [1, 128], strides = [1, 1]} : vector<4x128xf32> to vector<1x128xf32>
    %9 = vector.broadcast %7 : vector<2x1xf32> to vector<2x128xf32>
    %10 = vector.broadcast %8 : vector<1x128xf32> to vector<2x128xf32>
    %11 = arith.mulf %9, %10 : vector<2x128xf32>
    %12 = arith.addf %6, %11 : vector<2x128xf32>
    %13 = vector.extract_strided_slice %0 {offsets = [0, 2], sizes = [2, 1], strides = [1, 1]} : vector<2x4xf32> to vector<2x1xf32>
    %14 = vector.extract_strided_slice %1 {offsets = [2, 0], sizes = [1, 128], strides = [1, 1]} : vector<4x128xf32> to vector<1x128xf32>
    %15 = vector.broadcast %13 : vector<2x1xf32> to vector<2x128xf32>
    %16 = vector.broadcast %14 : vector<1x128xf32> to vector<2x128xf32>
    %17 = arith.mulf %15, %16 : vector<2x128xf32>
    %18 = arith.addf %12, %17 : vector<2x128xf32>
    %19 = vector.extract_strided_slice %0 {offsets = [0, 3], sizes = [2, 1], strides = [1, 1]} : vector<2x4xf32> to vector<2x1xf32>
    %20 = vector.extract_strided_slice %1 {offsets = [3, 0], sizes = [1, 128], strides = [1, 1]} : vector<4x128xf32> to vector<1x128xf32>
    %21 = vector.broadcast %19 : vector<2x1xf32> to vector<2x128xf32>
    %22 = vector.broadcast %20 : vector<1x128xf32> to vector<2x128xf32>
    %23 = arith.mulf %21, %22 : vector<2x128xf32>
    %24 = arith.addf %18, %23 : vector<2x128xf32>
    %c0_3 = arith.constant 0 : index
    %c0_4 = arith.constant 0 : index
    %25 = vector.load %arg3[%c0_3, %c0_4] : memref<1x128xi32, #tpu.memory_space<vmem>>, vector<1x128xi32>
    %cst = arith.constant 0.636619746 : f32
    %26 = vector.broadcast %cst : f32 to vector<2x128xf32>
    %27 = arith.mulf %24, %26 : vector<2x128xf32>
    %cst_5 = arith.constant 5.000000e-01 : f32
    %28 = vector.broadcast %cst_5 : f32 to vector<2x128xf32>
    %29 = arith.addf %27, %28 : vector<2x128xf32>
    %30 = math.floor %29 : vector<2x128xf32>
    %cst_6 = arith.constant 1.5703125 : f32
    %31 = vector.broadcast %cst_6 : f32 to vector<2x128xf32>
    %32 = arith.mulf %30, %31 : vector<2x128xf32>
    %33 = arith.subf %24, %32 : vector<2x128xf32>
    %cst_7 = arith.constant 4.83751297E-4 : f32
    %34 = vector.broadcast %cst_7 : f32 to vector<2x128xf32>
    %35 = arith.mulf %30, %34 : vector<2x128xf32>
    %36 = arith.subf %33, %35 : vector<2x128xf32>
    %cst_8 = arith.constant 7.549790e-08 : f32
    %37 = vector.broadcast %cst_8 : f32 to vector<2x128xf32>
    %38 = arith.mulf %30, %37 : vector<2x128xf32>
    %39 = arith.subf %36, %38 : vector<2x128xf32>
    %40 = arith.mulf %39, %39 : vector<2x128xf32>
    %cst_9 = arith.constant -1.95152956E-4 : f32
    %41 = vector.broadcast %cst_9 : f32 to vector<2x128xf32>
    %42 = arith.mulf %41, %40 : vector<2x128xf32>
    %cst_10 = arith.constant 0.00833216123 : f32
    %43 = vector.broadcast %cst_10 : f32 to vector<2x128xf32>
    %44 = arith.addf %42, %43 : vector<2x128xf32>
    %45 = arith.mulf %44, %40 : vector<2x128xf32>
    %cst_11 = arith.constant -0.166666552 : f32
    %46 = vector.broadcast %cst_11 : f32 to vector<2x128xf32>
    %47 = arith.addf %45, %46 : vector<2x128xf32>
    %48 = arith.mulf %40, %39 : vector<2x128xf32>
    %49 = arith.mulf %47, %48 : vector<2x128xf32>
    %50 = arith.addf %49, %39 : vector<2x128xf32>
    %cst_12 = arith.constant 2.44331568E-5 : f32
    %51 = vector.broadcast %cst_12 : f32 to vector<2x128xf32>
    %52 = arith.mulf %51, %40 : vector<2x128xf32>
    %cst_13 = arith.constant -0.00138873165 : f32
    %53 = vector.broadcast %cst_13 : f32 to vector<2x128xf32>
    %54 = arith.addf %52, %53 : vector<2x128xf32>
    %55 = arith.mulf %54, %40 : vector<2x128xf32>
    %cst_14 = arith.constant 0.0416666456 : f32
    %56 = vector.broadcast %cst_14 : f32 to vector<2x128xf32>
    %57 = arith.addf %55, %56 : vector<2x128xf32>
    %58 = arith.mulf %40, %40 : vector<2x128xf32>
    %59 = arith.mulf %57, %58 : vector<2x128xf32>
    %cst_15 = arith.constant 5.000000e-01 : f32
    %60 = vector.broadcast %cst_15 : f32 to vector<2x128xf32>
    %61 = arith.mulf %60, %40 : vector<2x128xf32>
    %62 = arith.subf %59, %61 : vector<2x128xf32>
    %cst_16 = arith.constant 1.000000e+00 : f32
    %63 = vector.broadcast %cst_16 : f32 to vector<2x128xf32>
    %64 = arith.addf %62, %63 : vector<2x128xf32>
    %65 = arith.fptosi %30 : vector<2x128xf32> to vector<2x128xi32>
    %66 = vector.broadcast %25 : vector<1x128xi32> to vector<2x128xi32>
    %67 = arith.addi %65, %66 : vector<2x128xi32>
    %c3_i32 = arith.constant 3 : i32
    %68 = vector.broadcast %c3_i32 : i32 to vector<2x128xi32>
    %69 = arith.andi %67, %68 : vector<2x128xi32>
    %c0_i32 = arith.constant 0 : i32
    %70 = vector.broadcast %c0_i32 : i32 to vector<2x128xi32>
    %71 = arith.cmpi eq, %69, %70 : vector<2x128xi32>
    %c1_i32 = arith.constant 1 : i32
    %72 = vector.broadcast %c1_i32 : i32 to vector<2x128xi32>
    %73 = arith.cmpi eq, %69, %72 : vector<2x128xi32>
    %c2_i32 = arith.constant 2 : i32
    %74 = vector.broadcast %c2_i32 : i32 to vector<2x128xi32>
    %75 = arith.cmpi eq, %69, %74 : vector<2x128xi32>
    %cst_17 = arith.constant 0.000000e+00 : f32
    %76 = vector.broadcast %cst_17 : f32 to vector<2x128xf32>
    %77 = arith.subf %76, %50 : vector<2x128xf32>
    %cst_18 = arith.constant 0.000000e+00 : f32
    %78 = vector.broadcast %cst_18 : f32 to vector<2x128xf32>
    %79 = arith.subf %78, %64 : vector<2x128xf32>
    %80 = arith.select %75, %77, %79 : vector<2x128xi1>, vector<2x128xf32>
    %81 = arith.select %73, %64, %80 : vector<2x128xi1>, vector<2x128xf32>
    %82 = arith.select %71, %50, %81 : vector<2x128xi1>, vector<2x128xf32>
    %c0_19 = arith.constant 0 : index
    %c0_20 = arith.constant 0 : index
    %83 = vector.load %arg4[%c0_19, %c0_20] : memref<2x128xf32, #tpu.memory_space<vmem>>, vector<2x128xf32>
    tpu.vector_store %arg4[%c0_19, %c0_20], %82 {strides = array<i32>} : memref<2x128xf32, #tpu.memory_space<vmem>>, vector<2x128xf32>,
    return
  }
  func.func @transform_0(%arg0: i32) -> (i32, i32) {
    %c0_i32 = arith.constant 0 : i32
    %c0_i32_0 = arith.constant 0 : i32
    return %arg0, %c0_i32 : i32, i32
  }
  func.func @transform_1(%arg0: i32) -> (i32, i32) {
    %c0_i32 = arith.constant 0 : i32
    %c0_i32_0 = arith.constant 0 : i32
    %c0_i32_1 = arith.constant 0 : i32
    return %c0_i32, %c0_i32_0 : i32, i32
  }
  func.func @transform_2(%arg0: i32) -> (i32, i32) {
    %c0_i32 = arith.constant 0 : i32
    %c0_i32_0 = arith.constant 0 : i32
    %c0_i32_1 = arith.constant 0 : i32
    return %c0_i32, %c0_i32_0 : i32, i32
  }
  func.func @transform_3(%arg0: i32) -> (i32, i32) {
    %c0_i32 = arith.constant 0 : i32
    %c0_i32_0 = arith.constant 0 : i32
    return %arg0, %c0_i32 : i32, i32
  }
}

</mosaic_0001>

<llo_original>
// kernel: tpu_custom_call.1
$region0: #{tpu_custom_call.1}
  #allocation0 [shape = 'u32[]', space=smem, size = 0x4, offset = 0x4, fixed_abs, tag = 'smem constant byte address 0x4 - core index']
  #allocation1 [shape = 'u32[144,128]{1,0:T(1,128)}', space=vmem, size = 0x12000, scoped, tag = 'internal scratch']
  %s0 = inlined_call_operand.hbm [shape: f32[2,4], index: 0, kind: input, shape index: {}]
  %s1 = inlined_call_operand.hbm [shape: f32[4,128], index: 1, kind: input, shape index: {}]
  %s2 = inlined_call_operand.vmem [shape: s32[1,128], index: 2, kind: input, shape index: {}]
  %s3 = inlined_call_operand.hbm [shape: f32[2,128], index: 3, kind: output, shape index: {}]
  %s4 = sld [smem:[#allocation0]]
  $region30: #{tpu_custom_call.1} parent=0
    _
  %s6 = ssub.s32 1, %s4
  %s7 = scalar_select 0, %s6, %s4
  $region1: #{tpu_custom_call.1} parent=0
    #allocation2 [shape = 'u8[1024]{0}', space=vmem, size = 0x400, scoped, tag = 'input window, operand 0, single buffered']
    #allocation3 [shape = 's32[1]{0}', space=sflag, size = 0x4, scoped, tag = 'scoped memory for tpu_custom_call.1']
    #allocation4 [shape = 's32[1]{0}', space=sflag, size = 0x4, scoped, tag = 'scoped memory for tpu_custom_call.1']
    #allocation5 [shape = 'u8[2048]{0}', space=vmem, size = 0x800, scoped, tag = 'input window, operand 1, single buffered']
    #allocation6 [shape = 's32[1]{0}', space=sflag, size = 0x4, scoped, tag = 'scoped memory for tpu_custom_call.1']
    #allocation7 [shape = 'u8[1024]{0}', space=vmem, size = 0x400, scoped, tag = 'output window, operand 0, single buffered']
    %8 = vsyncpa [#allocation3], 0
    %9 = vsyncpa [#allocation6], 0
    %10 = vsyncpa [#allocation4], 0
    // Predicated region
    $region2: #{tpu_custom_call.1} parent=1 // pred_check
      _
    $region3: #{tpu_custom_call.1} parent=1 // pred_check_branch
      %12 = sbr.rel (0) target = $region5
    $region4: #{tpu_custom_call.1} parent=1 // pred_region
      %s14 = ssub.s32 32, 32
      %15 = vsyncadd [#allocation3], %s14
      %s17 = sshll.u32 [#allocation2], 4
      %s18 = int_to_ptr.vmem [resolvable:$true] %s17
      %20 = dma.hbm_to_vmem [thread:$0]  %s0, 32, %s18, [#allocation3]
    $region5: #{tpu_custom_call.1} parent=1 // pred_fallthru
      _
    // Predicated region
    $region6: #{tpu_custom_call.1} parent=1 // pred_check
      _
    $region7: #{tpu_custom_call.1} parent=1 // pred_check_branch
      %22 = sbr.rel (0) target = $region9
    $region8: #{tpu_custom_call.1} parent=1 // pred_region
      %s24 = ssub.s32 64, 64
      %25 = vsyncadd [#allocation6], %s24
      %s27 = sshll.u32 [#allocation5], 4
      %s28 = int_to_ptr.vmem [resolvable:$true] %s27
      %30 = dma.hbm_to_vmem [thread:$0]  %s1, 64, %s28, [#allocation6]
    $region9: #{tpu_custom_call.1} parent=1 // pred_fallthru
      _
    // Predicated region
    $region10: #{tpu_custom_call.1} parent=1 // pred_check
      _
    $region11: #{tpu_custom_call.1} parent=1 // pred_check_branch
      %32 = sbr.rel (0) target = $region13
    $region12: #{tpu_custom_call.1} parent=1 // pred_region
      _
    $region13: #{tpu_custom_call.1} parent=1 // pred_fallthru
      _
    // Predicated region
    $region14: #{tpu_custom_call.1} parent=1 // pred_check
      _
    $region15: #{tpu_custom_call.1} parent=1 // pred_check_branch
      %34 = sbr.rel (0) target = $region17
    $region16: #{tpu_custom_call.1} parent=1 // pred_region
      %35 = dma.done [#allocation3], 32
    $region17: #{tpu_custom_call.1} parent=1 // pred_fallthru
      _
    // Predicated region
    $region18: #{tpu_custom_call.1} parent=1 // pred_check
      _
    $region19: #{tpu_custom_call.1} parent=1 // pred_check_branch
      %37 = sbr.rel (0) target = $region21
    $region20: #{tpu_custom_call.1} parent=1 // pred_region
      %38 = dma.done [#allocation6], 64
    $region21: #{tpu_custom_call.1} parent=1 // pred_fallthru
      _
    %v39 = vld [vmem:[#allocation2] sm:$0x3]
    %v40 = vld [vmem:[#allocation5] sm:$0xf]
    %42 = vset.pattern.permute.xlu0 0
    %43 = vperm.xlu0 %42, %v39
    %v44 = vpop.permute.xlu0 %43
    %v46 = vlaneseq
    %v47 = vshrl.u32 %v46, 7
    %v48 = vsub.s32 0, %v47
    %v49 = vrot.slane %v40, %v48
    %v50 = vmul.f32 %v44, %v49
    %51 = vset.pattern.permute.xlu0 1
    %52 = vperm.xlu0 %51, %v39
    %v53 = vpop.permute.xlu0 %52
    %v55 = vlaneseq
    %v56 = vshrl.u32 %v55, 7
    %v57 = vsub.s32 1, %v56
    %v58 = vrot.slane %v40, %v57
    %v59 = vmul.f32 %v53, %v58
    %v60 = vadd.f32 %v50, %v59
    %61 = vset.pattern.permute.xlu0 2
    %62 = vperm.xlu0 %61, %v39
    %v63 = vpop.permute.xlu0 %62
    %v65 = vlaneseq
    %v66 = vshrl.u32 %v65, 7
    %v67 = vsub.s32 2, %v66
    %v68 = vrot.slane %v40, %v67
    %v69 = vmul.f32 %v63, %v68
    %v70 = vadd.f32 %v60, %v69
    %71 = vset.pattern.permute.xlu0 3
    %72 = vperm.xlu0 %71, %v39
    %v73 = vpop.permute.xlu0 %72
    %v75 = vlaneseq
    %v76 = vshrl.u32 %v75, 7
    %v77 = vsub.s32 3, %v76
    %v78 = vrot.slane %v40, %v77
    %v79 = vmul.f32 %v73, %v78
    %v80 = vadd.f32 %v70, %v79
    %v81 = vld [vmem:[%s2] sm:$0x1]
    %v82 = vmul.f32 %v80, 0.63661975
    %v83 = vadd.f32 %v82, 0.5
    %v84 = vfloor.f32 %v83
    %v85 = vmul.f32 %v84, 1.5703125
    %v86 = vsub.f32 %v80, %v85
    %v87 = vmul.f32 %v84, 0.0004837513
    %v88 = vsub.f32 %v86, %v87
    %v89 = vmul.f32 %v84, 7.54979e-08
    %v90 = vsub.f32 %v88, %v89
    %v91 = vmul.f32 %v90, %v90
    %v92 = vmul.f32 %v91, -0.00019515296
    %v93 = vadd.f32 %v92, 0.008332161
    %v94 = vmul.f32 %v93, %v91
    %v95 = vadd.f32 %v94, -0.16666655
    %v96 = vmul.f32 %v91, %v90
    %v97 = vmul.f32 %v95, %v96
    %v98 = vadd.f32 %v97, %v90
    %v99 = vmul.f32 %v91, 2.4433157e-05
    %v100 = vadd.f32 %v99, -0.0013887316
    %v101 = vmul.f32 %v100, %v91
    %v102 = vadd.f32 %v101, 0.041666646
    %v103 = vmul.f32 %v91, %v91
    %v104 = vmul.f32 %v102, %v103
    %v105 = vmul.f32 %v91, 0.5
    %v106 = vsub.f32 %v104, %v105
    %v107 = vadd.f32 %v106, 1.0
    %v108 = vcvt.f32.s32.to.zero.pseudo %v84
    %v109 = vlaneseq
    %v110 = vshrl.u32 %v109, 7
    %v111 = vsub.s32 0, %v110
    %v112 = vrot.slane %v81, %v111
    %v113 = vadd.s32 %v108, %v112
    %v114 = vand.u32 %v113, 3
    %vm115 = vcmp.eq.s32.totalorder %v114, 0
    %vm116 = vcmp.eq.s32.totalorder %v114, 1
    %vm117 = vcmp.eq.s32.totalorder %v114, 2
    %v118 = vsub.f32 0.0, %v98
    %v119 = vsub.f32 0.0, %v107
    %v120 = vsel %vm117, %v118, %v119
    %v121 = vsel %vm116, %v107, %v120
    %v122 = vsel %vm115, %v98, %v121
    %123 = vst [vmem:[#allocation7] sm:$0x3] %v122
    // Predicated region
    $region22: #{tpu_custom_call.1} parent=1 // pred_check
      _
    $region23: #{tpu_custom_call.1} parent=1 // pred_check_branch
      %125 = sbr.rel (0) target = $region25
    $region24: #{tpu_custom_call.1} parent=1 // pred_region
      %s127 = ssub.s32 32, 32
      %128 = vsyncadd [#allocation4], %s127
      %s130 = sshll.u32 [#allocation7], 4
      %s131 = int_to_ptr.vmem [resolvable:$true] %s130
      %133 = dma.vmem_to_hbm [thread:$0]  %s131, 32, %s3, [#allocation4]
    $region25: #{tpu_custom_call.1} parent=1 // pred_fallthru
      _
    // Predicated region
    $region26: #{tpu_custom_call.1} parent=1 // pred_check
      _
    $region27: #{tpu_custom_call.1} parent=1 // pred_check_branch
      %135 = sbr.rel (0) target = $region29
    $region28: #{tpu_custom_call.1} parent=1 // pred_region
      %136 = dma.done [#allocation4], 32
    $region29: #{tpu_custom_call.1} parent=1 // pred_fallthru
      _
    %137 = vsyncpa [#allocation3], 1
    %138 = vsyncpa [#allocation6], 1
    %139 = vsyncpa [#allocation4], 1

</llo_original>
